<compile_context>
chip_gen: v5e
topology: v5e:2x2
jax: 0.10.0
libtpu: 0.0.40
codegen_flags: <defaults>
</compile_context>

<pallas_src>
import jax
import jax.numpy as jnp
from jax import lax
from jax.experimental import pallas as pl
from jax.experimental.pallas import tpu as pltpu


def _round_up(x, m):
    return ((x + m - 1) // m) * m


def _tpu_defaults():
    """(default tile_m, vmem_limit_bytes, is_v7) tuned per TPU generation."""
    try:
        kind = jax.devices()[0].device_kind.lower()
    except Exception:
        kind = ""
    if "v7" in kind:
        # v7x: ~310 FLOP/byte roofline, 64 MiB VMEM per TensorCore.
        return 512, 56 * 1024 * 1024, True
    if "v6" in kind:
        # v6e: ~650 FLOP/byte roofline, 128 MiB VMEM.
        return 1024, 100 * 1024 * 1024, False
    if "v5" in kind:
        # v5e: ~240 FLOP/byte roofline -> 256-row tiles already MXU-limited.
        return 256, 80 * 1024 * 1024, False
    return 256, 64 * 1024 * 1024, False


def _vmem_bytes(tm, tn, d_in, x_bytes, mxu_bytes, out_bytes):
    """Rough VMEM footprint of one pipelined grid step (double-buffered I/O)."""
    return (2 * tm * d_in * x_bytes          # x double buffer
            + tm * d_in * mxu_bytes          # xn scratch
            + 2 * d_in * tn * mxu_bytes      # W double buffer
            + 2 * tm * tn * out_bytes        # output double buffer
            + 2 * d_in * 4 + 2 * tn * 4)     # biases


def _make_kernel(normalize):
    def kernel(alpha_ref, x_ref, w_ref, b_in_ref, b_out_ref, o_ref, xn_ref):
        # alpha_ref: SMEM (1,)        alpha_in * alpha_out (combined scalar)
        # x_ref:     VMEM (TM, D_IN)  input rows (native dtype)
        # w_ref:     VMEM (D_IN, TN)  pre-transposed W tile (bf16 or f32)
        # b_in_ref:  VMEM (1, D_IN)   f32
        # b_out_ref: VMEM (1, TN)     f32
        # o_ref:     VMEM (TM, TN)    output tile
        # xn_ref:    VMEM (TM, D_IN)  scratch: normalized/scaled x, reused across N tiles
        j = pl.program_id(1)

        @pl.when(j == 0)
        def _():
            x = x_ref[...].astype(jnp.float32) - b_in_ref[...]   # broadcast (1, D_IN)
            if normalize:
                mean_sq = jnp.mean(x * x, axis=-1, keepdims=True)
                # rsqrt on the EUP; combined alpha folded into the per-row scale.
                # TODO(synk): like the PyTorch layer, no eps in the RMS denominator.
                x = x * (lax.rsqrt(mean_sq) * alpha_ref[0])
            xn_ref[...] = x.astype(xn_ref.dtype)

        # Canonical (TM, K) @ (K, TN) contraction -> MXU, f32 accumulation.
        y = lax.dot_general(
            xn_ref[...], w_ref[...],
            dimension_numbers=(((1,), (0,)), ((), ())),
            preferred_element_type=jnp.float32,
        )
        o_ref[...] = (y + b_out_ref[...]).astype(o_ref.dtype)

    return kernel


def prepare_procrustes_params(W, b_out=None, b_in=None, alpha_out=None,
                              alpha_in=None, normalize=False, *,
                              use_bf16_mxu=True):
    """One-time weight preparation (pad + transpose + cast), hoisted out of the hot path."""
    W = jnp.asarray(W, jnp.float32)
    d_out, d_in = W.shape
    mxu_dtype = jnp.bfloat16 if use_bf16_mxu else jnp.float32
    n_pad = _round_up(d_out, 128)

    # Pre-transposed, lane-padded weight: canonical (K, N) MXU RHS, lane-dense tn slabs.
    Wt = W.T
    if n_pad != d_out:
        Wt = jnp.pad(Wt, ((0, 0), (0, n_pad - d_out)))
    Wt = Wt.astype(mxu_dtype)

    if b_out is None:
        b_out_p = jnp.zeros((n_pad,), jnp.float32)
    else:
        b_out_p = jnp.pad(jnp.asarray(b_out, jnp.float32), ((0, n_pad - d_out),))
    b_in_p = (jnp.zeros((d_in,), jnp.float32) if b_in is None
              else jnp.asarray(b_in, jnp.float32))

    # alpha_in / alpha_out commute through the linear map -> single scalar
    # (only applied when normalize=True, matching the PyTorch module).
    a_in = 1.0 if alpha_in is None else alpha_in
    a_out = 1.0 if alpha_out is None else alpha_out
    alpha = (jnp.asarray(a_in, jnp.float32) * jnp.asarray(a_out, jnp.float32)).reshape(1)

    return dict(Wt=Wt, b_out=b_out_p.reshape(1, n_pad), b_in=b_in_p.reshape(1, d_in),
                alpha=alpha, d_out=int(d_out), normalize=bool(normalize))


def procrustes_apply(h, params, *, tile_m=None, tile_n=None, out_dtype=None):
    """h: (..., d_in) -> (..., d_out), using prepared params."""
    Wt = params["Wt"]
    d_in, n_pad = Wt.shape
    d_out = params["d_out"]
    normalize = params["normalize"]
    out_dtype = h.dtype if out_dtype is None else out_dtype

    orig_shape = h.shape
    assert orig_shape[-1] == d_in
    # No wrapper-side pad: ragged last M block is masked by Pallas.
    x2d = h.reshape(-1, d_in)
    M = x2d.shape[0]

    tm_default, vmem_limit, is_v7 = _tpu_defaults()
    tm_req = tm_default if tile_m is None else tile_m
    tm = min(_round_up(tm_req, 16), _round_up(M, 16))
    if is_v7 and M >= 32 and pl.cdiv(M, tm) < 2:
        # Keep both v7x TensorCores busy: the M axis is the "parallel" one.
        tm = _round_up(pl.cdiv(M, 2), 16)

    x_bytes = x2d.dtype.itemsize
    mxu_bytes = Wt.dtype.itemsize
    out_bytes = jnp.dtype(out_dtype).itemsize
    budget = int(vmem_limit * 0.85)

    if tile_n is not None:
        tn = min(_round_up(tile_n, 128), n_pad)
    elif _vmem_bytes(tm, n_pad, d_in, x_bytes, mxu_bytes, out_bytes) <= budget:
        # Weight-resident fast path: single N tile -> constant W block index,
        # W crosses HBM exactly once for the whole call.
        tn = n_pad
    else:
        tn = min(512, n_pad)
    # Shrink tm if the chosen tiles would overflow the VMEM budget.
    while _vmem_bytes(tm, tn, d_in, x_bytes, mxu_bytes, out_bytes) > budget and tm > 64:
        tm = max(64, _round_up(tm // 2, 16))

    gm = pl.cdiv(M, tm)
    gn = pl.cdiv(n_pad, tn)

    cost = pl.CostEstimate(
        flops=2 * M * n_pad * d_in,
        transcendentals=M if normalize else 0,
        bytes_accessed=int(M * d_in * x_bytes
                           + d_in * n_pad * mxu_bytes * (1 if tn == n_pad else gm)
                           + M * d_out * out_bytes),
    )

    out2d = pl.pallas_call(
        _make_kernel(normalize),
        out_shape=jax.ShapeDtypeStruct((M, d_out), out_dtype),
        grid_spec=pltpu.PrefetchScalarGridSpec(
            num_scalar_prefetch=0,
            grid=(gm, gn),
            in_specs=[
                pl.BlockSpec(memory_space=pltpu.MemorySpace.SMEM),   # alpha (1,)
                pl.BlockSpec((tm, d_in), lambda i, j: (i, 0)),       # x rows
                pl.BlockSpec((d_in, tn), lambda i, j: (0, j)),       # W tile (pre-transposed)
                pl.BlockSpec((1, d_in), lambda i, j: (0, 0)),        # b_in
                pl.BlockSpec((1, tn), lambda i, j: (0, j)),          # b_out
            ],
            out_specs=pl.BlockSpec((tm, tn), lambda i, j: (i, j)),
            scratch_shapes=[pltpu.VMEM((tm, d_in), Wt.dtype)],       # normalized-x cache
        ),
        compiler_params=pltpu.CompilerParams(
            # M axis parallel (megacore sharding); N axis "arbitrary" because the
            # normalized-x scratch is carried across it (recomputed at j == 0).
            dimension_semantics=("parallel", "arbitrary"),
            vmem_limit_bytes=vmem_limit,
        ),
        cost_estimate=cost,
    )(params["alpha"], x2d, Wt, params["b_in"], params["b_out"])

    return out2d.reshape(*orig_shape[:-1], d_out)


def _reference(h, W, b_out, b_in, alpha_out, alpha_in, normalize=True):
    x = h
    if b_in is not None:
        x = x - b_in
    if normalize:
        x_rms = jnp.sqrt(jnp.mean(x ** 2, axis=-1, keepdims=True))
        x = x / x_rms
        if alpha_in is not None:
            x = x * alpha_in
    y = jnp.matmul(x, W.T)
    if normalize and alpha_out is not None:
        y = y * alpha_out
    if b_out is not None:
        y = y + b_out
    return y


if __name__ == "__main__":
    key = jax.random.PRNGKey(0)
    # Small shapes that also exercise ragged tiles: M = 2*7 = 14 rows (tm=16),
    # d_out = 192 (pads to 256 output lanes; output write masked).
    batch, seq, d_in, d_out = 2, 7, 128, 192

    k_h, k_w, k_bi, k_bo = jax.random.split(key, 4)
    h = jax.random.normal(k_h, (batch, seq, d_in), dtype=jnp.float32)
    W = jax.random.normal(k_w, (d_out, d_in), dtype=jnp.float32) * 0.05
    b_in = jax.random.normal(k_bi, (d_in,), dtype=jnp.float32) * 0.1
    b_out = jax.random.normal(k_bo, (d_out,), dtype=jnp.float32) * 0.1
    alpha_in, alpha_out = 1.25, 0.75

    ref = _reference(h, W, b_out, b_in, alpha_out, alpha_in, normalize=True)

    # One-time weight prep (pad + transpose + cast), reused across calls.
    p_f32 = prepare_procrustes_params(W, b_out, b_in, alpha_out, alpha_in,
                                      normalize=True, use_bf16_mxu=False)
    p_bf16 = prepare_procrustes_params(W, b_out, b_in, alpha_out, alpha_in,
                                       normalize=True, use_bf16_mxu=True)

    # Exact-semantics path (f32 MXU operands), weight-resident (single N tile).
    out_f32 = jax.block_until_ready(procrustes_apply(h, p_f32))
    assert out_f32.shape == (batch, seq, d_out)
    assert jnp.allclose(out_f32, ref, atol=1e-3, rtol=1e-3), "f32 path mismatch"

    # Fast path: bf16 MXU operands with f32 accumulation (looser tolerance).
    out_bf16 = jax.block_until_ready(procrustes_apply(h, p_bf16))
    assert out_bf16.shape == (batch, seq, d_out)
    assert jnp.allclose(out_bf16, ref, atol=2e-2, rtol=2e-2), "bf16 path mismatch"

    # Force the streamed-W path (2 N tiles, ragged last one) to exercise the 2-D grid.
    out_stream = jax.block_until_ready(procrustes_apply(h, p_f32, tile_n=128))
    assert jnp.allclose(out_stream, ref, atol=1e-3, rtol=1e-3), "streamed-W path mismatch"

    # normalize=False branch of the module: y = (h - b_in) @ W.T + b_out.
    ref_nonorm = _reference(h, W, b_out, b_in, None, None, normalize=False)
    p_nonorm = prepare_procrustes_params(W, b_out, b_in, normalize=False,
                                         use_bf16_mxu=False)
    out_nonorm = jax.block_until_ready(procrustes_apply(h, p_nonorm))
    assert jnp.allclose(out_nonorm, ref_nonorm, atol=1e-3, rtol=1e-3), \
        "normalize=False path mismatch"

    print("KERNEL_OK")
</pallas_src>

<mosaic_0001>
module attributes {stable_mosaic.version = 11 : i64} {
  func.func @kernel(%arg0: i32, %arg1: i32, %arg2: memref<1xf32, #tpu.memory_space<smem>>, %arg3: memref<16x128xf32, #tpu.memory_space<vmem>>, %arg4: memref<128x256xf32, #tpu.memory_space<vmem>>, %arg5: memref<1x128xf32, #tpu.memory_space<vmem>>, %arg6: memref<1x256xf32, #tpu.memory_space<vmem>>, %arg7: memref<16x256xf32, #tpu.memory_space<vmem>>, %arg8: memref<16x128xf32, #tpu.memory_space<vmem>>) attributes {dimension_semantics = [#tpu.dimension_semantics<parallel>, #tpu.dimension_semantics<arbitrary>], iteration_bounds = array<i64: 1, 1>, scalar_prefetch = 0 : i64, scratch_operands = 1 : i64, tpu.core_type = #tpu.core_type<tc>, window_params = [{transform_indices = @transform_0, window_bounds = array<i64: 1>}, {transform_indices = @transform_1, window_bounds = array<i64: 16, 128>}, {transform_indices = @transform_2, window_bounds = array<i64: 128, 256>}, {pipeline_mode = #tpu.pipeline_mode<synchronous>, transform_indices = @transform_3, window_bounds = array<i64: 1, 128>}, {transform_indices = @transform_4, window_bounds = array<i64: 1, 256>}, {transform_indices = @transform_5, window_bounds = array<i64: 16, 256>}]} {
    %c0_i32 = arith.constant 0 : i32
    %0 = arith.cmpi eq, %arg1, %c0_i32 : i32
    %1 = arith.extui %0 : i1 to i32
    %c0_i32_0 = arith.constant 0 : i32
    %2 = arith.cmpi ne, %1, %c0_i32_0 : i32
    scf.if %2 {
      %c0_8 = arith.constant 0 : index
      %c0_9 = arith.constant 0 : index
      %10 = vector.load %arg3[%c0_8, %c0_9] : memref<16x128xf32, #tpu.memory_space<vmem>>, vector<16x128xf32>
      %c0_10 = arith.constant 0 : index
      %c0_11 = arith.constant 0 : index
      %11 = vector.load %arg5[%c0_10, %c0_11] : memref<1x128xf32, #tpu.memory_space<vmem>>, vector<1x128xf32>
      %12 = vector.broadcast %11 : vector<1x128xf32> to vector<16x128xf32>
      %13 = arith.subf %10, %12 : vector<16x128xf32>
      %14 = arith.mulf %13, %13 : vector<16x128xf32>
      %cst_12 = arith.constant dense<0.000000e+00> : vector<16xf32>
      %15 = vector.multi_reduction <add>, %14, %cst_12 [1] : vector<16x128xf32> to vector<16xf32>
      %16 = vector.shape_cast %15 : vector<16xf32> to vector<16x1xf32>
      %cst_13 = arith.constant 1.280000e+02 : f32
      %17 = vector.broadcast %cst_13 : f32 to vector<16x1xf32>
      %18 = arith.divf %16, %17 : vector<16x1xf32>
      %19 = math.rsqrt %18 : vector<16x1xf32>
      %c0_14 = arith.constant 0 : index
      %20 = memref.load %arg2[%c0_14] : memref<1xf32, #tpu.memory_space<smem>>
      %21 = vector.broadcast %20 : f32 to vector<16x1xf32>
      %22 = arith.mulf %19, %21 : vector<16x1xf32>
      %23 = vector.broadcast %22 : vector<16x1xf32> to vector<16x128xf32>
      %24 = arith.mulf %13, %23 : vector<16x128xf32>
      %c0_15 = arith.constant 0 : index
      %c0_16 = arith.constant 0 : index
      %25 = vector.load %arg8[%c0_15, %c0_16] : memref<16x128xf32, #tpu.memory_space<vmem>>, vector<16x128xf32>
      tpu.vector_store %arg8[%c0_15, %c0_16], %24 {strides = array<i32>} : memref<16x128xf32, #tpu.memory_space<vmem>>, vector<16x128xf32>,
    } else {
    }
    %c0 = arith.constant 0 : index
    %c0_1 = arith.constant 0 : index
    %3 = vector.load %arg8[%c0, %c0_1] : memref<16x128xf32, #tpu.memory_space<vmem>>, vector<16x128xf32>
    %c0_2 = arith.constant 0 : index
    %c0_3 = arith.constant 0 : index
    %4 = vector.load %arg4[%c0_2, %c0_3] : memref<128x256xf32, #tpu.memory_space<vmem>>, vector<128x256xf32>
    %cst = arith.constant dense<0.000000e+00> : vector<16x256xf32>
    %5 = tpu.matmul %3, %4, %cst {dimension_numbers = #tpu.dot_dimension_numbers<[1], [0], [0], [1], [0, 0, 1, 1], [], []>} : vector<16x128xf32>, vector<128x256xf32>, vector<16x256xf32> -> vector<16x256xf32>
    %c0_4 = arith.constant 0 : index
    %c0_5 = arith.constant 0 : index
    %6 = vector.load %arg6[%c0_4, %c0_5] : memref<1x256xf32, #tpu.memory_space<vmem>>, vector<1x256xf32>
    %7 = vector.broadcast %6 : vector<1x256xf32> to vector<16x256xf32>
    %8 = arith.addf %5, %7 : vector<16x256xf32>
    %c0_6 = arith.constant 0 : index
    %c0_7 = arith.constant 0 : index
    %9 = vector.load %arg7[%c0_6, %c0_7] : memref<16x256xf32, #tpu.memory_space<vmem>>, vector<16x256xf32>
    tpu.vector_store %arg7[%c0_6, %c0_7], %8 {strides = array<i32>} : memref<16x256xf32, #tpu.memory_space<vmem>>, vector<16x256xf32>,
    return
  }
  func.func @transform_0(%arg0: i32, %arg1: i32) -> i32 {
    %c0_i32 = arith.constant 0 : i32
    %c0_i32_0 = arith.constant 0 : i32
    return %c0_i32 : i32
  }
  func.func @transform_1(%arg0: i32, %arg1: i32) -> (i32, i32) {
    %c0_i32 = arith.constant 0 : i32
    %c0_i32_0 = arith.constant 0 : i32
    return %arg0, %c0_i32 : i32, i32
  }
  func.func @transform_2(%arg0: i32, %arg1: i32) -> (i32, i32) {
    %c0_i32 = arith.constant 0 : i32
    %c0_i32_0 = arith.constant 0 : i32
    return %c0_i32, %arg1 : i32, i32
  }
  func.func @transform_3(%arg0: i32, %arg1: i32) -> (i32, i32) {
    %c0_i32 = arith.constant 0 : i32
    %c0_i32_0 = arith.constant 0 : i32
    %c0_i32_1 = arith.constant 0 : i32
    return %c0_i32, %c0_i32_0 : i32, i32
  }
  func.func @transform_4(%arg0: i32, %arg1: i32) -> (i32, i32) {
    %c0_i32 = arith.constant 0 : i32
    %c0_i32_0 = arith.constant 0 : i32
    return %c0_i32, %arg1 : i32, i32
  }
  func.func @transform_5(%arg0: i32, %arg1: i32) -> (i32, i32) {
    %c0_i32 = arith.constant 0 : i32
    return %arg0, %arg1 : i32, i32
  }
}

</mosaic_0001>

<llo_original>
// kernel: tpu_custom_call.1
$region0: #{tpu_custom_call.1}
  #allocation0 [shape = 'u32[]', space=smem, size = 0x4, offset = 0x4, fixed_abs, tag = 'smem constant byte address 0x4 - core index']
  #allocation1 [shape = 'u32[72,128]{1,0:T(1,128)}', space=vmem, size = 0x9000, scoped, tag = 'internal scratch']
  #allocation2 [shape = 'f32[16,128]{1,0:T(8,128)}', space=vmem, size = 0x2000, scoped, tag = 'scratch operand']
  #allocation3 [shape = 'f32[1]{0:T(128)S(6)}', space=smem, size = 0x200, scoped, tag = 'scoped memory for tpu_custom_call.1']
  %s0 = inlined_call_operand.<no memory space> [shape: f32[1], index: 0, kind: input, shape index: {}]
  %s1 = inlined_call_operand.hbm [shape: f32[14,128], index: 1, kind: input, shape index: {}]
  %s2 = inlined_call_operand.hbm [shape: f32[128,256], index: 2, kind: input, shape index: {}]
  %s3 = inlined_call_operand.vmem [shape: f32[1,128], index: 3, kind: input, shape index: {}]
  %s4 = inlined_call_operand.vmem [shape: f32[1,256], index: 4, kind: input, shape index: {}]
  %s5 = inlined_call_operand.hbm [shape: f32[14,192], index: 5, kind: output, shape index: {}]
  %s6 = sld [smem:[#allocation0]]
  $region42: #{tpu_custom_call.1} parent=0
    _
  %s8 = ssub.s32 1, %s6
  %s9 = scalar_select 0, %s8, %s6
  %10 = sst [smem:[#allocation3]] %s0
  $region1: #{tpu_custom_call.1} parent=0
    #allocation4 [shape = 'u8[8192]{0}', space=vmem, size = 0x2000, scoped, tag = 'input window, operand 1, single buffered']
    #allocation5 [shape = 's32[1]{0}', space=sflag, size = 0x4, scoped, tag = 'scoped memory for tpu_custom_call.1']
    #allocation6 [shape = 's32[1]{0}', space=sflag, size = 0x4, scoped, tag = 'scoped memory for tpu_custom_call.1']
    #allocation7 [shape = 'u8[131072]{0}', space=vmem, size = 0x20000, scoped, tag = 'input window, operand 2, single buffered']
    #allocation8 [shape = 's32[1]{0}', space=sflag, size = 0x4, scoped, tag = 'scoped memory for tpu_custom_call.1']
    #allocation9 [shape = 'u8[16384]{0}', space=vmem, size = 0x4000, scoped, tag = 'output window, operand 0, single buffered']
    %11 = vsyncpa [#allocation5], 0
    %12 = vsyncpa [#allocation8], 0
    %13 = vsyncpa [#allocation6], 0
    // Predicated region
    $region2: #{tpu_custom_call.1} parent=1 // pred_check
      _
    $region3: #{tpu_custom_call.1} parent=1 // pred_check_branch
      %15 = sbr.rel (0) target = $region5
    $region4: #{tpu_custom_call.1} parent=1 // pred_region
      _
    $region5: #{tpu_custom_call.1} parent=1 // pred_fallthru
      _
    // Predicated region
    $region6: #{tpu_custom_call.1} parent=1 // pred_check
      _
    $region7: #{tpu_custom_call.1} parent=1 // pred_check_branch
      %17 = sbr.rel (0) target = $region9
    $region8: #{tpu_custom_call.1} parent=1 // pred_region
      %19 = vsyncadd [#allocation5], 0
      %s20 = sshll.u32 %s1, 4
      %s21 = int_to_ptr.hbm [resolvable:$true] %s20
      %s22 = sshll.u32 [#allocation4], 4
      %s23 = int_to_ptr.vmem [resolvable:$true] %s22
      %28 = dma.hbm_to_vmem [thread:$0]  %s21, 256, %s23, [#allocation5], 128, 128, 8
    $region9: #{tpu_custom_call.1} parent=1 // pred_fallthru
      _
    // Predicated region
    $region10: #{tpu_custom_call.1} parent=1 // pred_check
      _
    $region11: #{tpu_custom_call.1} parent=1 // pred_check_branch
      %30 = sbr.rel (0) target = $region13
    $region12: #{tpu_custom_call.1} parent=1 // pred_region
      %32 = vsyncadd [#allocation8], 0
      %s33 = sshll.u32 %s2, 4
      %s34 = int_to_ptr.hbm [resolvable:$true] %s33
      %s35 = sshll.u32 [#allocation7], 4
      %s36 = int_to_ptr.vmem [resolvable:$true] %s35
      %41 = dma.hbm_to_vmem [thread:$0]  %s34, 4096, %s36, [#allocation8], 256, 256, 16
    $region13: #{tpu_custom_call.1} parent=1 // pred_fallthru
      _
    // Predicated region
    $region14: #{tpu_custom_call.1} parent=1 // pred_check
      _
    $region15: #{tpu_custom_call.1} parent=1 // pred_check_branch
      %43 = sbr.rel (0) target = $region17
    $region16: #{tpu_custom_call.1} parent=1 // pred_region
      _
    $region17: #{tpu_custom_call.1} parent=1 // pred_fallthru
      _
    // Predicated region
    $region18: #{tpu_custom_call.1} parent=1 // pred_check
      _
    $region19: #{tpu_custom_call.1} parent=1 // pred_check_branch
      %45 = sbr.rel (0) target = $region21
    $region20: #{tpu_custom_call.1} parent=1 // pred_region
      _
    $region21: #{tpu_custom_call.1} parent=1 // pred_fallthru
      _
    // Predicated region
    $region22: #{tpu_custom_call.1} parent=1 // pred_check
      _
    $region23: #{tpu_custom_call.1} parent=1 // pred_check_branch
      %47 = sbr.rel (0) target = $region25
    $region24: #{tpu_custom_call.1} parent=1 // pred_region
      %49 = dma.done [#allocation5], 256
    $region25: #{tpu_custom_call.1} parent=1 // pred_fallthru
      _
    // Predicated region
    $region26: #{tpu_custom_call.1} parent=1 // pred_check
      _
    $region27: #{tpu_custom_call.1} parent=1 // pred_check_branch
      %51 = sbr.rel (0) target = $region29
    $region28: #{tpu_custom_call.1} parent=1 // pred_region
      %53 = dma.done [#allocation8], 4096
    $region29: #{tpu_custom_call.1} parent=1 // pred_fallthru
      _
    %p54 = scmp.eq.s32.totalorder 0, 0
    // Predicated region
    $region30: #{tpu_custom_call.1} parent=1 // pred_check
      %p55 = pneg %p54
    $region31: #{tpu_custom_call.1} parent=1 // pred_check_branch
      %57 = sbr.rel (%p55) target = $region33
    $region32: #{tpu_custom_call.1} parent=1 // pred_region
      %v58 = vld [vmem:[#allocation4] sm:$0xff]
      %v59 = vld [vmem:[#allocation4 + $0x8] sm:$0xff]
      %v60 = vld [vmem:[%s3] sm:$0x1]
      %v62 = vperm.slane %v60, 0
      %v64 = vsub.f32 %v58, %v62
      %v65 = vsub.f32 %v59, %v62
      %v66 = vmul.f32 %v64, %v64
      %v67 = vmul.f32 %v65, %v65
      %68 = vadd.xlane.f32.xlu0 %v66
      %v69 = vpop.xlane.xlu0 %68
      %70 = vadd.xlane.f32.xlu0 %v67
      %v71 = vpop.xlane.xlu0 %70
      %v72 = vrcp.pop 128.0
      %v73 = vmul.f32 128.0, %v72
      %v74 = vsub.f32 1.0, %v73
      %v75 = vmul.f32 %v72, %v74
      %v76 = vadd.f32 %v72, %v75
      %vm77 = vweird.f32 %v72
      %v78 = vsel %vm77, %v72, %v76
      %v79 = vmul.f32 %v69, %v78
      %v80 = vmul.f32 %v71, %v78
      %v81 = vrsqrt.pop %v79
      %v82 = vmul.f32 %v81, %v79
      %v83 = vmul.f32 %v82, %v81
      %v84 = vmul.f32 0.5, %v83
      %v85 = vsub.f32 1.5, %v84
      %v86 = vmul.f32 %v81, %v85
      %vm87 = vweird.f32 %v79
      %vm88 = vweird.f32 %v81
      %vm89 = vmor %vm87, %vm88
      %v90 = vsel %vm89, %v81, %v86
      %v91 = vrsqrt.pop %v80
      %v92 = vmul.f32 %v91, %v80
      %v93 = vmul.f32 %v92, %v91
      %v94 = vmul.f32 0.5, %v93
      %v95 = vsub.f32 1.5, %v94
      %v96 = vmul.f32 %v91, %v95
      %vm97 = vweird.f32 %v80
      %vm98 = vweird.f32 %v91
      %vm99 = vmor %vm97, %vm98
      %v100 = vsel %vm99, %v91, %v96
      %s101 = sld [smem:[#allocation3]]
      %v102 = vstv %s101
      %v103 = vmul.f32 %v90, %v102
      %v104 = vmul.f32 %v100, %v102
      %v105 = vmul.f32 %v64, %v103
      %v106 = vmul.f32 %v65, %v104
      %107 = vst [vmem:[#allocation2] sm:$0xff] %v105
      %108 = vst [vmem:[#allocation2 + $0x8] sm:$0xff] %v106
    $region33: #{tpu_custom_call.1} parent=1 // pred_fallthru
      _
    %v109 = vld [vmem:[#allocation2] sm:$0xff]
    %v110 = vld [vmem:[#allocation2 + $0x8] sm:$0xff]
    %v111 = vld [vmem:[#allocation7] sm:$0xff]
    %v112 = vld [vmem:[#allocation7 + $0x8] sm:$0xff]
    %v113 = vld [vmem:[#allocation7 + $0x10] sm:$0xff]
    %v114 = vld [vmem:[#allocation7 + $0x18] sm:$0xff]
    %v115 = vld [vmem:[#allocation7 + $0x20] sm:$0xff]
    %v116 = vld [vmem:[#allocation7 + $0x28] sm:$0xff]
    %v117 = vld [vmem:[#allocation7 + $0x30] sm:$0xff]
    %v118 = vld [vmem:[#allocation7 + $0x38] sm:$0xff]
    %v119 = vld [vmem:[#allocation7 + $0x40] sm:$0xff]
    %v120 = vld [vmem:[#allocation7 + $0x48] sm:$0xff]
    %v121 = vld [vmem:[#allocation7 + $0x50] sm:$0xff]
    %v122 = vld [vmem:[#allocation7 + $0x58] sm:$0xff]
    %v123 = vld [vmem:[#allocation7 + $0x60] sm:$0xff]
    %v124 = vld [vmem:[#allocation7 + $0x68] sm:$0xff]
    %v125 = vld [vmem:[#allocation7 + $0x70] sm:$0xff]
    %v126 = vld [vmem:[#allocation7 + $0x78] sm:$0xff]
    %v127 = vld [vmem:[#allocation7 + $0x80] sm:$0xff]
    %v128 = vld [vmem:[#allocation7 + $0x88] sm:$0xff]
    %v129 = vld [vmem:[#allocation7 + $0x90] sm:$0xff]
    %v130 = vld [vmem:[#allocation7 + $0x98] sm:$0xff]
    %v131 = vld [vmem:[#allocation7 + $0xa0] sm:$0xff]
    %v132 = vld [vmem:[#allocation7 + $0xa8] sm:$0xff]
    %v133 = vld [vmem:[#allocation7 + $0xb0] sm:$0xff]
    %v134 = vld [vmem:[#allocation7 + $0xb8] sm:$0xff]
    %v135 = vld [vmem:[#allocation7 + $0xc0] sm:$0xff]
    %v136 = vld [vmem:[#allocation7 + $0xc8] sm:$0xff]
    %v137 = vld [vmem:[#allocation7 + $0xd0] sm:$0xff]
    %v138 = vld [vmem:[#allocation7 + $0xd8] sm:$0xff]
    %v139 = vld [vmem:[#allocation7 + $0xe0] sm:$0xff]
    %v140 = vld [vmem:[#allocation7 + $0xe8] sm:$0xff]
    %v141 = vld [vmem:[#allocation7 + $0xf0] sm:$0xff]
    %v142 = vld [vmem:[#allocation7 + $0xf8] sm:$0xff]
    %v143 = vld [vmem:[%s4] sm:$0x3]
    %v145 = vperm.slane %v143, 0
    %v146 = vperm.slane %v143, 1
    %149 = vmatpush.msra.mxu0 %v141
    %150 = vmatpush.msra.mxu0 %v139
    %151 = vmatpush.msra.mxu0 %v137
    %152 = vmatpush.msra.mxu0 %v135
    %153 = vmatpush.msra.mxu0 %v133
    %154 = vmatpush.msra.mxu0 %v131
    %155 = vmatpush.msra.mxu0 %v129
    %156 = vmatpush.msra.mxu0 %v127
    %157 = vmatpush.msra.mxu0 %v125
    %158 = vmatpush.msra.mxu0 %v123
    %159 = vmatpush.msra.mxu0 %v121
    %160 = vmatpush.msra.mxu0 %v119
    %161 = vmatpush.msra.mxu0 %v117
    %162 = vmatpush.msra.mxu0 %v115
    %163 = vmatpush.msra.mxu0 %v113
    %164 = vmatpush.msra.mxu0 %v111
    %165 = vmatmul.f32.gmra.mxu0 %v109
    %v166 = vpop.f32.mrf.mxu0
    %v167 = vadd.f32 %v145, %v166
    %168 = vmatmul.f32.gmra.mxu0 %v110
    %v169 = vpop.f32.mrf.mxu0
    %v170 = vadd.f32 %v145, %v169
    %171 = vdwg.mxu0
    %172 = vmatpush.msra.mxu0 %v142
    %173 = vmatpush.msra.mxu0 %v140
    %174 = vmatpush.msra.mxu0 %v138
    %175 = vmatpush.msra.mxu0 %v136
    %176 = vmatpush.msra.mxu0 %v134
    %177 = vmatpush.msra.mxu0 %v132
    %178 = vmatpush.msra.mxu0 %v130
    %179 = vmatpush.msra.mxu0 %v128
    %180 = vmatpush.msra.mxu0 %v126
    %181 = vmatpush.msra.mxu0 %v124
    %182 = vmatpush.msra.mxu0 %v122
    %183 = vmatpush.msra.mxu0 %v120
    %184 = vmatpush.msra.mxu0 %v118
    %185 = vmatpush.msra.mxu0 %v116
    %186 = vmatpush.msra.mxu0 %v114
    %187 = vmatpush.msra.mxu0 %v112
    %188 = vmatmul.f32.gmra.mxu0 %v109
    %v189 = vpop.f32.mrf.mxu0
    %v190 = vadd.f32 %v146, %v189
    %191 = vmatmul.f32.gmra.mxu0 %v110
    %v192 = vpop.f32.mrf.mxu0
    %v193 = vadd.f32 %v146, %v192
    %194 = vdwg.mxu0
    %195 = vst [vmem:[#allocation9] sm:$0xff] %v167
    %196 = vst [vmem:[#allocation9 + $0x8] sm:$0xff] %v190
    %197 = vst [vmem:[#allocation9 + $0x10] sm:$0xff] %v170
    %198 = vst [vmem:[#allocation9 + $0x18] sm:$0xff] %v193
    // Predicated region
    $region34: #{tpu_custom_call.1} parent=1 // pred_check
      _
    $region35: #{tpu_custom_call.1} parent=1 // pred_check_branch
      %200 = sbr.rel (0) target = $region37
    $region36: #{tpu_custom_call.1} parent=1 // pred_region
      %202 = vsyncadd [#allocation6], 0
      %s203 = sshll.u32 [#allocation9], 4
      %s204 = int_to_ptr.vmem [resolvable:$true] %s203
      %s205 = sshll.u32 %s5, 4
      %s206 = int_to_ptr.hbm [resolvable:$true] %s205
      %211 = dma.vmem_to_hbm [thread:$0]  %s204, 512, %s206, [#allocation6], 256, 256, 16
    $region37: #{tpu_custom_call.1} parent=1 // pred_fallthru
      _
    // Predicated region
    $region38: #{tpu_custom_call.1} parent=1 // pred_check
      _
    $region39: #{tpu_custom_call.1} parent=1 // pred_check_branch
      %213 = sbr.rel (0) target = $region41
    $region40: #{tpu_custom_call.1} parent=1 // pred_region
      %215 = dma.done [#allocation6], 512
    $region41: #{tpu_custom_call.1} parent=1 // pred_fallthru
      _
    %216 = vsyncpa [#allocation5], 1
    %217 = vsyncpa [#allocation8], 1
    %218 = vsyncpa [#allocation6], 1

</llo_original>
